<compile_context>
chip_gen: v6e
topology: v6e:2x2x1
jax: 0.10.0
libtpu: 0.0.40
codegen_flags: <defaults>
</compile_context>

<pallas_src>
import functools

import jax
import jax.numpy as jnp
import numpy as np
from jax.experimental import pallas as pl
from jax.experimental.pallas import tpu as pltpu


def _round_up(x, m):
    return (x + m - 1) // m * m


def _basic_block1d_kernel(x_ref, w_ref, shift_ref, o_ref, *, K, matmul_dtype):
    """Single fused step over the batch-packed sequence.

    x_ref:     (C_in_p, W_in)    f32; batch packed along lanes with per-batch
                                 conv padding already applied; zeros past B*Lp.
    w_ref:     (C_out, K*C_in_p) matmul_dtype; BN-scale-folded, tap-major rows
                                 (row k*C_in_p + c  <->  weight[:, c, k]*scale).
    shift_ref: (C_out, 1)        f32; beta + (bias - running_mean) * scale.
    o_ref:     (C_out, W_out)    f32; lanes b*Lp + j (j < L_out) are valid.
    """
    W_out = o_ref.shape[-1]
    x = x_ref[...]
    # Stack the K shifted windows along the contraction (sublane) axis.  Each
    # unaligned lane slice costs one XLU lane-rotate (free slot vs. the MXU);
    # this replaces K depth-C_in matmuls with a single depth-K*C_in matmul.
    xk = jnp.concatenate([x[:, k:k + W_out] for k in range(K)], axis=0)
    acc = jnp.dot(w_ref[...], xk.astype(matmul_dtype),
                  preferred_element_type=jnp.float32)
    # Folded conv-bias + BatchNorm shift, ReLU, single lane-dense store.
    o_ref[...] = jnp.maximum(acc + shift_ref[...], 0.0).astype(o_ref.dtype)


def basic_block1d(x, weight, bias, gamma, beta, running_mean, running_var,
                  *, padding=1, eps=1e-5, matmul_dtype=jnp.bfloat16):
    """x: (B, C_in, L) f32 -> (B, C_out, L_out) f32.  Conv1d(stride=1)+BN(eval)+ReLU."""
    B, C_in, L = x.shape
    C_out, C_in_w, K = weight.shape
    assert C_in == C_in_w

    Lp = L + 2 * padding
    L_out = Lp - K + 1

    # ---- fold BatchNorm(eval) and conv bias into the weights / one shift ----
    scale = gamma / jnp.sqrt(running_var + eps)                 # (C_out,)
    shift = beta + (bias - running_mean) * scale                # (C_out,)
    w_scaled = weight * scale[:, None, None]                    # (C_out, C_in, K)

    # ---- pad channels to sublane (8) granularity; taps become a leading axis ----
    C_in_p = _round_up(C_in, 8)
    w_scaled = jnp.pad(w_scaled, ((0, 0), (0, C_in_p - C_in), (0, 0)))
    w_fused = jnp.transpose(w_scaled, (0, 2, 1)).reshape(C_out, K * C_in_p)
    w_fused = w_fused.astype(matmul_dtype)
    shift_col = shift.reshape(C_out, 1).astype(jnp.float32)

    # ---- pack the batch into the lane axis: (B, C_in, L) -> (C_in_p, B*Lp) ----
    # (wrapper-side layout plumbing only; the compute stays in the kernel)
    x_pad = jnp.pad(x, ((0, 0), (0, C_in_p - C_in), (padding, padding)))
    x_packed = jnp.transpose(x_pad, (1, 0, 2)).reshape(C_in_p, B * Lp)
    W_out = _round_up(B * Lp, 128)            # lane-dense output width
    W_in = _round_up(W_out + K - 1, 128)      # room for the K shifted views
    x_packed = jnp.pad(x_packed, ((0, 0), (0, W_in - B * Lp))).astype(jnp.float32)

    kernel = functools.partial(_basic_block1d_kernel, K=K, matmul_dtype=matmul_dtype)

    # Single lane-dense grid step (everything fits VMEM at these sizes).
    # NOTE: a scaled-up variant (large B*Lp / channels, esp. v7x's 64 MiB VMEM)
    # should tile the lane axis into >=512-lane blocks with a (K-1)-lane halo
    # and stream x/weights as bf16; at these sizes one step is optimal.
    out_full = pl.pallas_call(
        kernel,
        out_shape=jax.ShapeDtypeStruct((C_out, W_out), jnp.float32),
        grid_spec=pltpu.PrefetchScalarGridSpec(
            num_scalar_prefetch=0,
            grid=(1,),
            in_specs=[
                pl.BlockSpec((C_in_p, W_in), lambda i: (0, 0)),
                pl.BlockSpec((C_out, K * C_in_p), lambda i: (0, 0)),
                pl.BlockSpec((C_out, 1), lambda i: (0, 0)),
            ],
            out_specs=pl.BlockSpec((C_out, W_out), lambda i: (0, 0)),
        ),
        compiler_params=pltpu.CompilerParams(
            dimension_semantics=("arbitrary",)),
    )(x_packed, w_fused, shift_col)

    # Unpack: valid outputs live at lanes b*Lp + j, j in [0, L_out).
    out = out_full[:, :B * Lp].reshape(C_out, B, Lp)[:, :, :L_out]
    return jnp.transpose(out, (1, 0, 2)).astype(x.dtype)


def _reference(x, weight, bias, gamma, beta, running_mean, running_var,
               *, padding=1, eps=1e-5):
    """Plain-JAX reference matching PyTorch Conv1d + BN(eval) + ReLU."""
    y = jax.lax.conv_general_dilated(
        x, weight,
        window_strides=(1,),
        padding=[(padding, padding)],
        dimension_numbers=("NCH", "OIH", "NCH"),
    )
    y = y + bias[None, :, None]
    scale = gamma / jnp.sqrt(running_var + eps)
    shift = beta - running_mean * scale
    y = y * scale[None, :, None] + shift[None, :, None]
    return jnp.maximum(y, 0.0)


if __name__ == "__main__":
    # Concrete module: BasicBlock1D(in_channels=4, out_channels=8,
    #                               kernel_size=3, padding=1)
    B, C_in, C_out, L, K, PAD = 2, 4, 8, 16, 3, 1

    key = jax.random.PRNGKey(0)
    kx, kw, kb, kg, kbt, km, kv = jax.random.split(key, 7)

    x = jax.random.normal(kx, (B, C_in, L), dtype=jnp.float32)
    weight = jax.random.normal(kw, (C_out, C_in, K), dtype=jnp.float32) * 0.1
    bias = jax.random.normal(kb, (C_out,), dtype=jnp.float32) * 0.1
    gamma = 1.0 + 0.1 * jax.random.normal(kg, (C_out,), dtype=jnp.float32)
    beta = 0.1 * jax.random.normal(kbt, (C_out,), dtype=jnp.float32)
    running_mean = 0.1 * jax.random.normal(km, (C_out,), dtype=jnp.float32)
    running_var = 1.0 + 0.1 * jax.random.uniform(kv, (C_out,), dtype=jnp.float32)

    ref = _reference(x, weight, bias, gamma, beta, running_mean, running_var,
                     padding=PAD)

    # Default path: bf16 matmul operands (v6e/v7x), f32 accumulate + epilogue.
    out_bf16 = jax.block_until_ready(
        basic_block1d(x, weight, bias, gamma, beta, running_mean, running_var,
                      padding=PAD, matmul_dtype=jnp.bfloat16))
    np.testing.assert_allclose(np.asarray(out_bf16), np.asarray(ref),
                               rtol=2e-2, atol=2e-2)

    # Exact-f32 path (v5e / strict accuracy) — tight tolerance.
    out_f32 = jax.block_until_ready(
        basic_block1d(x, weight, bias, gamma, beta, running_mean, running_var,
                      padding=PAD, matmul_dtype=jnp.float32))
    np.testing.assert_allclose(np.asarray(out_f32), np.asarray(ref),
                               rtol=1e-5, atol=1e-5)

    print("KERNEL_OK")
</pallas_src>

<mosaic_0001>
module attributes {stable_mosaic.version = 11 : i64} {
  func.func @_basic_block1d_kernel(%arg0: i32, %arg1: memref<8x256xf32, #tpu.memory_space<vmem>>, %arg2: memref<8x24xbf16, #tpu.memory_space<vmem>>, %arg3: memref<8x1xf32, #tpu.memory_space<vmem>>, %arg4: memref<8x128xf32, #tpu.memory_space<vmem>>) attributes {dimension_semantics = [#tpu.dimension_semantics<arbitrary>], iteration_bounds = array<i64: 1>, scalar_prefetch = 0 : i64, scratch_operands = 0 : i64, tpu.core_type = #tpu.core_type<tc>, window_params = [{pipeline_mode = #tpu.pipeline_mode<synchronous>, transform_indices = @transform_0, window_bounds = array<i64: 8, 256>}, {pipeline_mode = #tpu.pipeline_mode<synchronous>, transform_indices = @transform_1, window_bounds = array<i64: 8, 24>}, {pipeline_mode = #tpu.pipeline_mode<synchronous>, transform_indices = @transform_2, window_bounds = array<i64: 8, 1>}, {pipeline_mode = #tpu.pipeline_mode<synchronous>, transform_indices = @transform_3, window_bounds = array<i64: 8, 128>}]} {
    %c0 = arith.constant 0 : index
    %c0_0 = arith.constant 0 : index
    %0 = vector.load %arg1[%c0, %c0_0] : memref<8x256xf32, #tpu.memory_space<vmem>>, vector<8x256xf32>
    %1 = vector.extract_strided_slice %0 {offsets = [0, 0], sizes = [8, 128], strides = [1, 1]} : vector<8x256xf32> to vector<8x128xf32>
    %2 = vector.extract_strided_slice %0 {offsets = [0, 1], sizes = [8, 128], strides = [1, 1]} : vector<8x256xf32> to vector<8x128xf32>
    %3 = vector.extract_strided_slice %0 {offsets = [0, 2], sizes = [8, 128], strides = [1, 1]} : vector<8x256xf32> to vector<8x128xf32>
    %4 = tpu.concatenate %1, %2, %3 in 0 : vector<8x128xf32>, vector<8x128xf32>, vector<8x128xf32> -> vector<24x128xf32>
    %c0_1 = arith.constant 0 : index
    %c0_2 = arith.constant 0 : index
    %5 = vector.load %arg2[%c0_1, %c0_2] : memref<8x24xbf16, #tpu.memory_space<vmem>>, vector<8x24xbf16>
    %6 = arith.truncf %4 : vector<24x128xf32> to vector<24x128xbf16>
    %cst = arith.constant dense<0.000000e+00> : vector<8x128xf32>
    %7 = tpu.matmul %5, %6, %cst {dimension_numbers = #tpu.dot_dimension_numbers<[1], [0], [0], [1], [0, 0, 1, 1], [], []>} : vector<8x24xbf16>, vector<24x128xbf16>, vector<8x128xf32> -> vector<8x128xf32>
    %c0_3 = arith.constant 0 : index
    %c0_4 = arith.constant 0 : index
    %8 = vector.load %arg3[%c0_3, %c0_4] : memref<8x1xf32, #tpu.memory_space<vmem>>, vector<8x1xf32>
    %9 = vector.broadcast %8 : vector<8x1xf32> to vector<8x128xf32>
    %10 = arith.addf %7, %9 : vector<8x128xf32>
    %cst_5 = arith.constant 0.000000e+00 : f32
    %11 = vector.broadcast %cst_5 : f32 to vector<8x128xf32>
    %12 = arith.maximumf %10, %11 : vector<8x128xf32>
    %c0_6 = arith.constant 0 : index
    %c0_7 = arith.constant 0 : index
    %13 = vector.load %arg4[%c0_6, %c0_7] : memref<8x128xf32, #tpu.memory_space<vmem>>, vector<8x128xf32>
    tpu.vector_store %arg4[%c0_6, %c0_7], %12 {strides = array<i32>} : memref<8x128xf32, #tpu.memory_space<vmem>>, vector<8x128xf32>,
    return
  }
  func.func @transform_0(%arg0: i32) -> (i32, i32) {
    %c0_i32 = arith.constant 0 : i32
    %c0_i32_0 = arith.constant 0 : i32
    %c0_i32_1 = arith.constant 0 : i32
    return %c0_i32, %c0_i32_0 : i32, i32
  }
  func.func @transform_1(%arg0: i32) -> (i32, i32) {
    %c0_i32 = arith.constant 0 : i32
    %c0_i32_0 = arith.constant 0 : i32
    %c0_i32_1 = arith.constant 0 : i32
    return %c0_i32, %c0_i32_0 : i32, i32
  }
  func.func @transform_2(%arg0: i32) -> (i32, i32) {
    %c0_i32 = arith.constant 0 : i32
    %c0_i32_0 = arith.constant 0 : i32
    %c0_i32_1 = arith.constant 0 : i32
    return %c0_i32, %c0_i32_0 : i32, i32
  }
  func.func @transform_3(%arg0: i32) -> (i32, i32) {
    %c0_i32 = arith.constant 0 : i32
    %c0_i32_0 = arith.constant 0 : i32
    %c0_i32_1 = arith.constant 0 : i32
    return %c0_i32, %c0_i32_0 : i32, i32
  }
}

</mosaic_0001>

<llo_original>
// kernel: tpu_custom_call.1
$region0: #{tpu_custom_call.1}
  #allocation0 [shape = 'u32[]', space=smem, size = 0x4, offset = 0x4, fixed_abs, tag = 'smem constant byte address 0x4 - core index']
  #allocation1 [shape = 'u32[144,128]{1,0:T(1,128)}', space=vmem, size = 0x12000, scoped, tag = 'internal scratch']
  %s0 = inlined_call_operand.hbm [shape: f32[8,256], index: 0, kind: input, shape index: {}]
  %s1 = inlined_call_operand.vmem [shape: bf16[8,24], index: 1, kind: input, shape index: {}]
  %s2 = inlined_call_operand.vmem [shape: f32[8,1], index: 2, kind: input, shape index: {}]
  %s3 = inlined_call_operand.hbm [shape: f32[8,128], index: 3, kind: output, shape index: {}]
  %s4 = sld [smem:[#allocation0]]
  $region26: #{tpu_custom_call.1} parent=0
    _
  %s6 = ssub.s32 1, %s4
  %s7 = scalar_select 0, %s6, %s4
  $region1: #{tpu_custom_call.1} parent=0
    #allocation2 [shape = 'u8[8192]{0}', space=vmem, size = 0x2000, scoped, tag = 'input window, operand 0, single buffered']
    #allocation3 [shape = 's32[1]{0}', space=sflag, size = 0x4, scoped, tag = 'scoped memory for tpu_custom_call.1']
    #allocation4 [shape = 's32[1]{0}', space=sflag, size = 0x4, scoped, tag = 'scoped memory for tpu_custom_call.1']
    #allocation5 [shape = 'u8[4096]{0}', space=vmem, size = 0x1000, scoped, tag = 'output window, operand 0, single buffered']
    %8 = vsyncpa [#allocation3], 0
    %9 = vsyncpa [#allocation4], 0
    // Predicated region
    $region2: #{tpu_custom_call.1} parent=1 // pred_check
      _
    $region3: #{tpu_custom_call.1} parent=1 // pred_check_branch
      %11 = sbr.rel (0) target = $region5
    $region4: #{tpu_custom_call.1} parent=1 // pred_region
      %s13 = ssub.s32 256, 256
      %14 = vsyncadd [#allocation3], %s13
      %s16 = sshll.u32 [#allocation2], 4
      %s17 = int_to_ptr.vmem [resolvable:$true] %s16
      %19 = dma.hbm_to_vmem [thread:$0]  %s0, 256, %s17, [#allocation3]
    $region5: #{tpu_custom_call.1} parent=1 // pred_fallthru
      _
    // Predicated region
    $region6: #{tpu_custom_call.1} parent=1 // pred_check
      _
    $region7: #{tpu_custom_call.1} parent=1 // pred_check_branch
      %21 = sbr.rel (0) target = $region9
    $region8: #{tpu_custom_call.1} parent=1 // pred_region
      _
    $region9: #{tpu_custom_call.1} parent=1 // pred_fallthru
      _
    // Predicated region
    $region10: #{tpu_custom_call.1} parent=1 // pred_check
      _
    $region11: #{tpu_custom_call.1} parent=1 // pred_check_branch
      %23 = sbr.rel (0) target = $region13
    $region12: #{tpu_custom_call.1} parent=1 // pred_region
      _
    $region13: #{tpu_custom_call.1} parent=1 // pred_fallthru
      _
    // Predicated region
    $region14: #{tpu_custom_call.1} parent=1 // pred_check
      _
    $region15: #{tpu_custom_call.1} parent=1 // pred_check_branch
      %25 = sbr.rel (0) target = $region17
    $region16: #{tpu_custom_call.1} parent=1 // pred_region
      %26 = dma.done [#allocation3], 256
    $region17: #{tpu_custom_call.1} parent=1 // pred_fallthru
      _
    %v28 = vld [vmem:[#allocation2] sm:$0xff]
    %v29 = vld [vmem:[#allocation2 + $0x8] sm:$0xff]
    %32 = vrot.lane.b32.xlu0 %v28, 127
    %v33 = vpop.permute.xlu0 %32
    %34 = vrot.lane.b32.xlu0 %v29, 127
    %v35 = vpop.permute.xlu0 %34
    %vm36 = vcmask 1039360
    %v37 = vsel %vm36, %v33, %v35
    %39 = vrot.lane.b32.xlu0 %v28, 126
    %v40 = vpop.permute.xlu0 %39
    %41 = vrot.lane.b32.xlu0 %v29, 126
    %v42 = vpop.permute.xlu0 %41
    %vm43 = vcmask 1031168
    %v44 = vsel %vm43, %v40, %v42
    %v46 = vld [vmem:[%s1] sm:$0xf]
    %v47 = vpack.c.bf16 %v37, %v28
    %v48 = vpack.c.bf16 %v44, %v44
    %v49 = vld [vmem:[%s2] sm:$0xff]
    %51 = vset.pattern.permute.xlu0 0
    %52 = vperm.xlu0 %51, %v49
    %v53 = vpop.permute.xlu0 %52
    %vm55 = vcmask 195584
    %v57 = vsel %vm55, %v46, 0
    %vm59 = vcmask 1043456
    %v61 = vsel %vm59, %v48, 0
    %63 = vmatprep.subr.bf16.mxu0 0
    %64 = vmatpush1.bf16.msra.mxu0 0
    %65 = vmatprep.subr.bf16.mxu0 0
    %66 = vmatpush1.bf16.msra.mxu0 0
    %67 = vmatprep.subr.bf16.mxu0 0
    %68 = vmatpush1.bf16.msra.mxu0 0
    %69 = vmatprep.subr.bf16.mxu0 0
    %70 = vmatpush1.bf16.msra.mxu0 0
    %71 = vmatprep.subr.bf16.mxu0 0
    %72 = vmatpush1.bf16.msra.mxu0 0
    %73 = vmatprep.subr.bf16.mxu0 0
    %74 = vmatpush1.bf16.msra.mxu0 0
    %75 = vmatprep.subr.bf16.mxu0 0
    %76 = vmatpush1.bf16.msra.mxu0 %v61
    %77 = vmatprep.subr.bf16.mxu0 0
    %78 = vmatpush1.bf16.msra.mxu0 %v47
    %79 = vmatprep.subr.bf16.mxu0 0
    %80 = vmatpush2.bf16.msra.mxu0 0
    %81 = vmatprep.subr.bf16.mxu0 0
    %82 = vmatpush2.bf16.msra.mxu0 0
    %83 = vmatprep.subr.bf16.mxu0 0
    %84 = vmatpush2.bf16.msra.mxu0 0
    %85 = vmatprep.subr.bf16.mxu0 0
    %86 = vmatpush2.bf16.msra.mxu0 0
    %87 = vmatprep.subr.bf16.mxu0 0
    %88 = vmatpush2.bf16.msra.mxu0 0
    %89 = vmatprep.subr.bf16.mxu0 0
    %90 = vmatpush2.bf16.msra.mxu0 0
    %91 = vmatprep.subr.bf16.mxu0 0
    %92 = vmatpush2.bf16.msra.mxu0 0
    %93 = vmatprep.subr.bf16.mxu0 0
    %94 = vmatpush2.bf16.msra.mxu0 0
    %95 = vmatprep.mubr.bf16.mxu0 0
    %96 = vmatmul.mubr.bf16.gmra.mxu0 %v57
    %v97 = vpop.f32.mrf.mxu0
    %v98 = vadd.f32 %v53, %v97
    %v99 = vpop.f32.mrf.mxu0
    %v100 = vpop.f32.mrf.mxu0
    %v101 = vpop.f32.mrf.mxu0
    %102 = vdwg.mxu0
    %v103 = vmax.f32 %v98, 0.0
    %104 = vst [vmem:[#allocation5] sm:$0xff] %v103
    // Predicated region
    $region18: #{tpu_custom_call.1} parent=1 // pred_check
      _
    $region19: #{tpu_custom_call.1} parent=1 // pred_check_branch
      %106 = sbr.rel (0) target = $region21
    $region20: #{tpu_custom_call.1} parent=1 // pred_region
      %s108 = ssub.s32 128, 128
      %109 = vsyncadd [#allocation4], %s108
      %s111 = sshll.u32 [#allocation5], 4
      %s112 = int_to_ptr.vmem [resolvable:$true] %s111
      %114 = dma.vmem_to_hbm [thread:$0]  %s112, 128, %s3, [#allocation4]
    $region21: #{tpu_custom_call.1} parent=1 // pred_fallthru
      _
    // Predicated region
    $region22: #{tpu_custom_call.1} parent=1 // pred_check
      _
    $region23: #{tpu_custom_call.1} parent=1 // pred_check_branch
      %116 = sbr.rel (0) target = $region25
    $region24: #{tpu_custom_call.1} parent=1 // pred_region
      %117 = dma.done [#allocation4], 128
    $region25: #{tpu_custom_call.1} parent=1 // pred_fallthru
      _
    %118 = vsyncpa [#allocation3], 1
    %119 = vsyncpa [#allocation4], 1

</llo_original>
